<compile_context>
chip_gen: v7x
topology: tpu7x:2x2x1
jax: 0.10.0
libtpu: 0.0.40
codegen_flags: <defaults>
</compile_context>

<pallas_src>
import math

import jax
import jax.numpy as jnp
from jax.experimental import pallas as pl
from jax.experimental.pallas import tpu as pltpu


def make_positional_encoding(d_model: int, max_len: int = 512) -> jnp.ndarray:
    """Deterministic PE table identical to the PyTorch __init__ math.

    Returns shape (1, max_len, d_model), float32 (non-trainable buffer).
    """
    position = jnp.arange(0, max_len, dtype=jnp.float32)[:, None]            # (max_len, 1)
    div_term = jnp.exp(
        jnp.arange(0, d_model, 2, dtype=jnp.float32)
        * -(math.log(10000.0) / d_model)
    )                                                                        # (d_model//2,)
    pe = jnp.zeros((max_len, d_model), dtype=jnp.float32)
    pe = pe.at[:, 0::2].set(jnp.sin(position * div_term))
    pe = pe.at[:, 1::2].set(jnp.cos(position * div_term))
    return pe[None, :, :]                                                    # (1, max_len, d_model)


def _add_pe_kernel(x_ref, pe_ref, o_ref):
    # x/o: (b_tile, g_tile, c_tile); pe: (1, g_tile, c_tile) broadcast over batch.
    # Pure VPU add on a lane-dense block; broadcast over the leading (non-layout)
    # dim is free (same vregs reused for every batch slice).
    o_ref[...] = (x_ref[...] + pe_ref[...]).astype(o_ref.dtype)


def _vmem_budgets():
    """(target_block_bytes, scoped_vmem_cap) tuned per TPU generation."""
    try:
        cap = int(pltpu.get_tpu_info().vmem_capacity_bytes)
    except Exception:
        cap = 64 << 20                      # be conservative if query unavailable
    if cap <= (64 << 20):
        # v7x-class: 64 MiB VMEM per TC -> smaller blocks, <=32 MiB scoped request.
        return 2 << 20, 32 << 20
    # v5e / v6e: 128 MiB VMEM -> bigger blocks amortize the ~0.35 us/step overhead.
    return 4 << 20, 64 << 20


def _smallest_fold(S: int, D: int):
    """Smallest F dividing S with (F*D) % 128 == 0, or None if impossible."""
    need = 128 // math.gcd(D, 128)          # any valid F must be a multiple of this
    best = None
    i = 1
    while i * i <= S:
        if S % i == 0:
            for f in (i, S // i):
                if f % need == 0 and (best is None or f < best):
                    best = f
        i += 1
    return best


def _choose_tiles(B: int, G: int, C: int, itemsize: int, target_bytes: int):
    """Pick (b_tile, g_tile, c_tile) obeying the (8,128) rule, ~target_bytes blocks."""
    target_elems = max(8 * 128, target_bytes // itemsize)

    # 1) Lane dim first (widest unmasked stores).  C is a multiple of 128 here.
    min_g = min(G, 8)
    c_tile = min(C, max(128, (target_elems // min_g) // 128 * 128))

    # 2) Sublane dim: multiple of 8, or the full dim (always legal).
    g_budget = max(1, target_elems // c_tile)
    if G <= g_budget or G < 8:
        g_tile = G
    else:
        g_tile = min(G, max(8, (g_budget // 8) * 8))

    # 3) Fold extra batches into one block only when a whole (G, C) slab is small.
    b_tile = 1
    if g_tile == G and c_tile == C:
        g_pad = -(-G // 8) * 8              # conservative: sublane padding in VMEM
        b_tile = int(max(1, min(B, target_elems // max(1, g_pad * C))))
    return b_tile, g_tile, c_tile


def positional_encoding_forward(x: jnp.ndarray, pe_table: jnp.ndarray, *,
                                min_pallas_bytes: int = 1 << 20) -> jnp.ndarray:
    """x: (B, S, D); pe_table: (1, max_len>=S, D). Returns x + pe_table[:, :S]."""
    B, S, D = x.shape
    assert S <= pe_table.shape[1], (
        f"sequence length {S} exceeds PE table max_len {pe_table.shape[1]}")
    pe_slice = pe_table[:, :S, :]

    itemsize = jnp.dtype(x.dtype).itemsize
    total_bytes = B * S * D * itemsize
    F = _smallest_fold(S, D)

    # Early exit: tiny tensors (pallas_call overhead dominates) or no 128-aligned
    # folding exists -> let XLA fuse the add with neighboring ops.
    if F is None or total_bytes < min_pallas_bytes:
        return x + pe_slice.astype(x.dtype)

    G, C = S // F, F * D                    # x viewed as (B, G, C), C % 128 == 0
    target_block_bytes, vmem_cap = _vmem_budgets()
    b_tile, g_tile, c_tile = _choose_tiles(B, G, C, itemsize, target_block_bytes)

    x3 = x.reshape(B, G, C)
    # NOTE: casting PE to x.dtype before the add (halves PE HBM traffic for bf16);
    # tiny numerical deviation vs an f32-promoted add, identical for f32 inputs.
    pe3 = pe_slice.reshape(1, G, C).astype(x.dtype)

    # Batch axis innermost: PE's block index is constant across consecutive steps,
    # so its DMA is not re-issued per batch.  All axes are independent (parallel).
    grid = (pl.cdiv(G, g_tile), pl.cdiv(C, c_tile), pl.cdiv(B, b_tile))

    # Scoped-VMEM request: double-buffered x + out blocks, PE strip, headroom.
    g_pad = -(-min(g_tile, G) // 8) * 8
    block_bytes = b_tile * g_pad * c_tile * itemsize
    pe_bytes = g_pad * c_tile * itemsize
    vmem_limit = int(min(max(4 * block_bytes + 2 * pe_bytes + (4 << 20), 16 << 20),
                         vmem_cap))

    out3 = pl.pallas_call(
        _add_pe_kernel,
        out_shape=jax.ShapeDtypeStruct((B, G, C), x.dtype),
        grid=grid,
        in_specs=[
            pl.BlockSpec((b_tile, g_tile, c_tile), lambda g, c, b: (b, g, c)),  # x
            pl.BlockSpec((1, g_tile, c_tile), lambda g, c, b: (0, g, c)),       # PE
        ],
        out_specs=pl.BlockSpec((b_tile, g_tile, c_tile), lambda g, c, b: (b, g, c)),
        compiler_params=pltpu.CompilerParams(
            dimension_semantics=("parallel", "parallel", "parallel"),
            vmem_limit_bytes=vmem_limit,
        ),
        # TODO(synk): optionally pass input_output_aliases={0: 0} when callers
        # never reuse x, to drop the extra B*S*D*itemsize HBM footprint.
    )(x3, pe3)

    return out3.reshape(B, S, D)


class PositionalEncoding:
    """JAX/Pallas equivalent of the PyTorch module (fixed sinusoidal buffer)."""

    def __init__(self, d_model: int, max_len: int = 512):
        self.d_model = d_model
        self.max_len = max_len
        self.pe = make_positional_encoding(d_model, max_len)   # (1, max_len, d) f32
        self._pe_cache = {}                                     # (S, dtype) -> cast slice

    def _pe_for(self, S: int, dtype) -> jnp.ndarray:
        key = (S, jnp.dtype(dtype).name)
        if key not in self._pe_cache:
            self._pe_cache[key] = self.pe[:, :S, :].astype(dtype)
        return self._pe_cache[key]

    def __call__(self, x: jnp.ndarray, *, min_pallas_bytes: int = 1 << 20) -> jnp.ndarray:
        pe = self._pe_for(x.shape[1], x.dtype)
        return positional_encoding_forward(x, pe, min_pallas_bytes=min_pallas_bytes)


if __name__ == "__main__":
    key = jax.random.PRNGKey(0)

    # 1) Small shapes consistent with the module: batch=2, seq=8, d_model=32.
    B, S, D = 2, 8, 32
    module = PositionalEncoding(D, max_len=512)
    x = jax.random.normal(key, (B, S, D), dtype=jnp.float32)
    out = jax.block_until_ready(module(x, min_pallas_bytes=0))   # force the Pallas path
    ref = x + module.pe[:, :S, :]
    assert out.shape == (B, S, D)
    assert jnp.allclose(out, ref, atol=1e-6), "mismatch vs reference (small shape)"

    # 2) Slightly larger shape through the Pallas path (multi-row fold, G >= 8).
    B2, S2, D2 = 2, 128, 64
    module2 = PositionalEncoding(D2, max_len=512)
    x2 = jax.random.normal(jax.random.PRNGKey(1), (B2, S2, D2), dtype=jnp.float32)
    out2 = jax.block_until_ready(module2(x2, min_pallas_bytes=0))
    ref2 = x2 + module2.pe[:, :S2, :]
    assert jnp.allclose(out2, ref2, atol=1e-6), "mismatch vs reference (larger shape)"

    # 3) Default threshold on a tiny input exercises the fused-XLA fallback path.
    out3 = jax.block_until_ready(module(x))
    assert jnp.allclose(out3, ref, atol=1e-6), "mismatch vs reference (fallback path)"

    print("KERNEL_OK")
</pallas_src>

<mosaic_0001>
module attributes {stable_mosaic.version = 11 : i64} {
  func.func @_add_pe_kernel(%arg0: i32, %arg1: i32, %arg2: i32, %arg3: memref<2x2x128xf32, #tpu.memory_space<vmem>>, %arg4: memref<1x2x128xf32, #tpu.memory_space<vmem>>, %arg5: memref<2x2x128xf32, #tpu.memory_space<vmem>>) attributes {dimension_semantics = [#tpu.dimension_semantics<parallel>, #tpu.dimension_semantics<parallel>, #tpu.dimension_semantics<parallel>], iteration_bounds = array<i64: 1, 1, 1>, scalar_prefetch = 0 : i64, scratch_operands = 0 : i64, tpu.core_type = #tpu.core_type<tc>, window_params = [{transform_indices = @transform_0, window_bounds = array<i64: 2, 2, 128>}, {transform_indices = @transform_1, window_bounds = array<i64: 1, 2, 128>}, {transform_indices = @transform_2, window_bounds = array<i64: 2, 2, 128>}]} {
    %c0 = arith.constant 0 : index
    %c0_0 = arith.constant 0 : index
    %c0_1 = arith.constant 0 : index
    %0 = vector.load %arg3[%c0, %c0_0, %c0_1] : memref<2x2x128xf32, #tpu.memory_space<vmem>>, vector<2x2x128xf32>
    %c0_2 = arith.constant 0 : index
    %c0_3 = arith.constant 0 : index
    %c0_4 = arith.constant 0 : index
    %1 = vector.load %arg4[%c0_2, %c0_3, %c0_4] : memref<1x2x128xf32, #tpu.memory_space<vmem>>, vector<1x2x128xf32>
    %2 = vector.broadcast %1 : vector<1x2x128xf32> to vector<2x2x128xf32>
    %3 = arith.addf %0, %2 : vector<2x2x128xf32>
    %c0_5 = arith.constant 0 : index
    %c0_6 = arith.constant 0 : index
    %c0_7 = arith.constant 0 : index
    %4 = vector.load %arg5[%c0_5, %c0_6, %c0_7] : memref<2x2x128xf32, #tpu.memory_space<vmem>>, vector<2x2x128xf32>
    tpu.vector_store %arg5[%c0_5, %c0_6, %c0_7], %3 {strides = array<i32>} : memref<2x2x128xf32, #tpu.memory_space<vmem>>, vector<2x2x128xf32>,
    return
  }
  func.func @transform_0(%arg0: i32, %arg1: i32, %arg2: i32) -> (i32, i32, i32) {
    %c0_i32 = arith.constant 0 : i32
    return %arg2, %arg0, %arg1 : i32, i32, i32
  }
  func.func @transform_1(%arg0: i32, %arg1: i32, %arg2: i32) -> (i32, i32, i32) {
    %c0_i32 = arith.constant 0 : i32
    %c0_i32_0 = arith.constant 0 : i32
    return %c0_i32, %arg0, %arg1 : i32, i32, i32
  }
  func.func @transform_2(%arg0: i32, %arg1: i32, %arg2: i32) -> (i32, i32, i32) {
    %c0_i32 = arith.constant 0 : i32
    return %arg2, %arg0, %arg1 : i32, i32, i32
  }
}

</mosaic_0001>

<llo_original>
// kernel: tpu_custom_call.1
$region0: #{tpu_custom_call.1}
  #allocation0 [shape = 'u32[]', space=smem, size = 0x4, offset = 0x4, fixed_abs, tag = 'smem constant byte address 0x4 - core index']
  #allocation1 [shape = 'u32[144,128]{1,0:T(1,128)}', space=vmem, size = 0x12000, scoped, tag = 'internal scratch']
  %s0 = inlined_call_operand.hbm [shape: f32[2,2,128], index: 0, kind: input, shape index: {}]
  %s1 = inlined_call_operand.vmem [shape: f32[1,2,128], index: 1, kind: input, shape index: {}]
  %s2 = inlined_call_operand.hbm [shape: f32[2,2,128], index: 2, kind: output, shape index: {}]
  %s3 = sld [smem:[#allocation0]]
  $region22: #{tpu_custom_call.1} parent=0
    _
  %s5 = ssub.s32 1, %s3
  %s6 = scalar_select 0, %s5, %s3
  $region1: #{tpu_custom_call.1} parent=0
    #allocation2 [shape = 'u8[2048]{0}', space=vmem, size = 0x800, scoped, tag = 'input window, operand 0, single buffered']
    #allocation3 [shape = 's32[1]{0}', space=sflag, size = 0x4, scoped, tag = 'scoped memory for tpu_custom_call.1']
    #allocation4 [shape = 's32[1]{0}', space=sflag, size = 0x4, scoped, tag = 'scoped memory for tpu_custom_call.1']
    #allocation5 [shape = 'u8[2048]{0}', space=vmem, size = 0x800, scoped, tag = 'output window, operand 0, single buffered']
    %7 = vsyncpa [#allocation3], 0
    %8 = vsyncpa [#allocation4], 0
    // Predicated region
    $region2: #{tpu_custom_call.1} parent=1 // pred_check
      _
    $region3: #{tpu_custom_call.1} parent=1 // pred_check_branch
      %10 = sbr.rel (0) target = $region5
    $region4: #{tpu_custom_call.1} parent=1 // pred_region
      %s12 = ssub.s32 64, 64
      %13 = vsyncadd [#allocation3], %s12
      %s14 = sshll.u32 [#allocation2], 4
      %s15 = int_to_ptr.vmem [resolvable:$true] %s14
      %20 = dma.hbm_to_vmem [thread:$0]  %s0, 64, %s15, [#allocation3], 32, 32, 2
    $region5: #{tpu_custom_call.1} parent=1 // pred_fallthru
      _
    // Predicated region
    $region6: #{tpu_custom_call.1} parent=1 // pred_check
      _
    $region7: #{tpu_custom_call.1} parent=1 // pred_check_branch
      %22 = sbr.rel (0) target = $region9
    $region8: #{tpu_custom_call.1} parent=1 // pred_region
      _
    $region9: #{tpu_custom_call.1} parent=1 // pred_fallthru
      _
    // Predicated region
    $region10: #{tpu_custom_call.1} parent=1 // pred_check
      _
    $region11: #{tpu_custom_call.1} parent=1 // pred_check_branch
      %24 = sbr.rel (0) target = $region13
    $region12: #{tpu_custom_call.1} parent=1 // pred_region
      %25 = dma.done [#allocation3], 64
    $region13: #{tpu_custom_call.1} parent=1 // pred_fallthru
      _
    %v26 = vld [vmem:[#allocation2] sm:$0x3]
    %v27 = vld [vmem:[#allocation2 + $0x2] sm:$0x3]
    %v28 = vld [vmem:[%s1] sm:$0x3]
    %v29 = vadd.f32 %v26, %v28
    %v30 = vadd.f32 %v27, %v28
    %31 = vst [vmem:[#allocation5] sm:$0x3] %v29
    %32 = vst [vmem:[#allocation5 + $0x2] sm:$0x3] %v30
    // Predicated region
    $region14: #{tpu_custom_call.1} parent=1 // pred_check
      _
    $region15: #{tpu_custom_call.1} parent=1 // pred_check_branch
      %34 = sbr.rel (0) target = $region17
    $region16: #{tpu_custom_call.1} parent=1 // pred_region
      %s36 = ssub.s32 64, 64
      %37 = vsyncadd [#allocation4], %s36
      %s38 = sshll.u32 [#allocation5], 4
      %s39 = int_to_ptr.vmem [resolvable:$true] %s38
      %44 = dma.vmem_to_hbm [thread:$0]  %s39, 64, %s2, [#allocation4], 32, 32, 2
    $region17: #{tpu_custom_call.1} parent=1 // pred_fallthru
      _
    // Predicated region
    $region18: #{tpu_custom_call.1} parent=1 // pred_check
      _
    $region19: #{tpu_custom_call.1} parent=1 // pred_check_branch
      %46 = sbr.rel (0) target = $region21
    $region20: #{tpu_custom_call.1} parent=1 // pred_region
      %47 = dma.done [#allocation4], 64
    $region21: #{tpu_custom_call.1} parent=1 // pred_fallthru
      _
    %48 = vsyncpa [#allocation3], 1
    %49 = vsyncpa [#allocation4], 1

</llo_original>
